<compile_context>
chip_gen: v7x
topology: tpu7x:2x2x1
jax: 0.10.0
libtpu: 0.0.40
codegen_flags: <defaults>
</compile_context>

<pallas_src>
import functools

import jax
import jax.numpy as jnp
import numpy as np
from jax.experimental import pallas as pl
from jax.experimental.pallas import tpu as pltpu


# ----------------------------------------------------------------------------
# Generation-aware budgets & tile selection
# ----------------------------------------------------------------------------

def _vmem_budget():
    """Returns (vmem_limit_bytes, per-tile byte target) for this chip."""
    try:
        cap = int(pltpu.get_tpu_info().vmem_capacity_bytes)
    except Exception:  # query unavailable -> assume v5e/v6e-class 128 MiB
        cap = 128 << 20
    # Leave headroom: ~48 MiB on v7x (64 MiB physical), ~96 MiB on v5e/v6e.
    limit = min((cap * 3) // 4, 96 << 20)
    # Streaming calls hold ~4 tile-sized buffers (in + out, double-buffered).
    tile_target = max(limit // 8, 2 << 20)
    return int(limit), int(tile_target)


def _divisors(n):
    ds = set()
    i = 1
    while i * i <= n:
        if n % i == 0:
            ds.add(i)
            ds.add(n // i)
        i += 1
    return sorted(ds)


def _choose_tile(n, unit, row_bytes, target_bytes):
    """Largest divisor of `n` aligned to `unit` whose tile fits target_bytes.

    Falls back to the smallest aligned divisor (still pipelines, may exceed
    the byte target) and finally to `n` itself.
    """
    fitting = None
    smallest_aligned = None
    for d in _divisors(n):
        if d % unit == 0:
            smallest_aligned = d if smallest_aligned is None else min(smallest_aligned, d)
            if d * row_bytes <= target_bytes:
                fitting = d if fitting is None else max(fitting, d)
    if fitting is not None:
        return fitting
    if smallest_aligned is not None:
        return smallest_aligned
    # TODO(synk): use a pl.cdiv grid with a masked/padded remainder tile for
    # awkward n instead of one full-extent block.
    return n


def _sublane_pack(itemsize):
    return {4: 8, 2: 16, 1: 32}.get(itemsize, 8)


# ----------------------------------------------------------------------------
# Kernels
# ----------------------------------------------------------------------------

def _pool_kernel(x_ref, psum_ref):
    """Accumulate the per-(B, H) f32 sum of one S-tile into the resident output."""
    @pl.when(pl.program_id(1) == 0)
    def _():
        psum_ref[...] = jnp.zeros_like(psum_ref)

    # TODO(synk): verify the astype fuses into the strip-mined reduce (no
    # tile-sized f32 temp) for sub-32-bit activations; chunk the sum if not.
    psum_ref[...] += jnp.sum(x_ref[...].astype(jnp.float32), axis=1)[None]


def _mlp_kernel(scalars_ref, psum_ref, w1_ref, b1_ref, w2_ref, b2_ref,
                conf_ref, loss_ref, pred_ref, *, s_total, max_num_experts):
    """Mean -> Linear -> ReLU -> fused head Linear -> masked softmax/CE/argmax."""
    expert_idx = scalars_ref[0]       # runtime scalar (SMEM)
    num_experts = scalars_ref[1]      # runtime scalar (SMEM)
    # TODO(synk): no guard for num_experts == 0 or expert_idx >= num_experts;
    # host must pass valid scalars (same contract as the torch module).

    pooled = jnp.sum(psum_ref[...], axis=0) * jnp.float32(1.0 / s_total)   # (B, H)

    h = jnp.dot(pooled.astype(w1_ref.dtype), w1_ref[...],
                preferred_element_type=jnp.float32) + b1_ref[...]
    h = jnp.maximum(h, 0.0)
    full = jnp.dot(h.astype(w2_ref.dtype), w2_ref[...],
                   preferred_element_type=jnp.float32) + b2_ref[...]        # (B, 2*Emax)

    B, two_e = full.shape
    col = jax.lax.broadcasted_iota(jnp.int32, (B, two_e), 1)
    cur_valid = col < num_experts
    nxt_valid = (col >= max_num_experts) & (col < max_num_experts + num_experts)
    sel = col == expert_idx

    # masked softmax over the "current" head
    cur = jnp.where(cur_valid, full, -jnp.inf)
    cmax = jnp.max(cur, axis=1, keepdims=True)
    cexp = jnp.where(cur_valid, jnp.exp(full - cmax), 0.0)
    csum = jnp.sum(cexp, axis=1, keepdims=True)
    conf_ref[...] = jnp.sum(jnp.where(sel, cexp, 0.0), axis=1, keepdims=True) / csum

    # cross entropy vs constant target expert_idx, mean over batch
    lse = jnp.log(csum) + cmax
    tgt = jnp.sum(jnp.where(sel, full, 0.0), axis=1, keepdims=True)
    loss = jnp.sum(lse - tgt) * jnp.float32(1.0 / B)
    loss_ref[...] = jnp.zeros((1, 1), jnp.float32) + loss

    # argmax of the masked "next" head (first-max index, torch semantics)
    nxt = jnp.where(nxt_valid, full, -jnp.inf)
    nmax = jnp.max(nxt, axis=1, keepdims=True)
    pred = jnp.min(
        jnp.where(nxt_valid & (nxt == nmax), col - max_num_experts, two_e),
        axis=1, keepdims=True)
    pred_ref[...] = pred.astype(jnp.int32)


def _scale_kernel(x_ref, conf_ref, o_ref):
    """new_states tile = x tile * confidence; multiply in f32, cast result only."""
    conf = conf_ref[...]                          # (B, 1) f32
    if len(x_ref.shape) == 3:
        conf = conf[:, :, None]
    o_ref[...] = (x_ref[...].astype(jnp.float32) * conf).astype(o_ref.dtype)


# ----------------------------------------------------------------------------
# Wrapper
# ----------------------------------------------------------------------------

def praxis_controller_forward(params, expert_output, expert_idx,
                              current_num_experts, *, s_tile=None,
                              mlp_dtype=None):
    x = expert_output
    squeeze = False
    if x.ndim == 2:
        # TODO(synk): torch's 2D path broadcasts (B,H)*(B,1,1)->(B,B,H); we use
        # the per-row (B,1,H) interpretation instead.
        x = x[:, None, :]
        squeeze = True
    B, S, H = x.shape

    w1, b1, w2, b2 = params["w1"], params["b1"], params["w2"], params["b2"]
    if mlp_dtype is not None:
        # e.g. jnp.bfloat16 on v7x: halves weight VMEM / DMA and feeds the MXU
        # at native rate; accumulation stays f32 in-kernel.
        w1 = w1.astype(mlp_dtype)
        w2 = w2.astype(mlp_dtype)
    H2 = w1.shape[1]
    max_num_experts = w2.shape[1] // 2
    two_e = 2 * max_num_experts

    itemsize = np.dtype(x.dtype).itemsize
    vmem_limit, tile_target = _vmem_budget()
    pack = _sublane_pack(itemsize)

    ts = s_tile if s_tile is not None else _choose_tile(
        S, pack, B * H * itemsize, tile_target)
    assert S % ts == 0, f"s_tile={ts} must divide S={S}"
    n_s = S // ts
    # Split the pooling stream across both TensorCores (v7x megacore).
    n_par = 2 if (n_s >= 2 and n_s % 2 == 0) else 1
    n_inner = n_s // n_par

    # Runtime scalars -> SMEM scalar prefetch (no recompile per expert_idx / E).
    scalars = jnp.array([expert_idx, current_num_experts], dtype=jnp.int32)

    # ---- call 1: streamed sequence-sum (HBM-bound, both TCs) ----------------
    pool_cost = pl.CostEstimate(
        flops=int(B * S * H),
        transcendentals=0,
        bytes_accessed=int(B * S * H * itemsize + n_par * B * H * 4),
    )
    psum = pl.pallas_call(
        _pool_kernel,
        out_shape=jax.ShapeDtypeStruct((n_par, B, H), jnp.float32),
        grid_spec=pltpu.PrefetchScalarGridSpec(
            num_scalar_prefetch=0,
            grid=(n_par, n_inner),
            in_specs=[pl.BlockSpec((B, ts, H),
                                   lambda p, s: (0, p * n_inner + s, 0))],
            out_specs=pl.BlockSpec((1, B, H), lambda p, s: (p, 0, 0)),
        ),
        compiler_params=pltpu.CompilerParams(
            dimension_semantics=("parallel", "arbitrary"),
            vmem_limit_bytes=vmem_limit),
        cost_estimate=pool_cost,
    )(x)

    # ---- call 2: tiny MLP epilogue (weights live only here) -----------------
    w_itemsize = np.dtype(w1.dtype).itemsize
    mlp_cost = pl.CostEstimate(
        flops=int(n_par * B * H + 2 * B * H * H2 + 2 * B * H2 * two_e
                  + 16 * B * two_e),
        transcendentals=int(B * two_e + B),
        bytes_accessed=int(4 * n_par * B * H
                           + w_itemsize * (H * H2 + H2 * two_e)
                           + 4 * (H2 + two_e + 2 * B + 1)),
    )
    kernel_mlp = functools.partial(_mlp_kernel, s_total=S,
                                   max_num_experts=max_num_experts)
    conf, aux_loss, next_pred = pl.pallas_call(
        kernel_mlp,
        out_shape=(
            jax.ShapeDtypeStruct((B, 1), jnp.float32),
            jax.ShapeDtypeStruct((1, 1), jnp.float32),
            jax.ShapeDtypeStruct((B, 1), jnp.int32),
        ),
        grid_spec=pltpu.PrefetchScalarGridSpec(
            num_scalar_prefetch=1,
            grid=(1,),
            in_specs=[
                pl.BlockSpec((n_par, B, H), lambda i, sc: (0, 0, 0)),
                pl.BlockSpec((H, H2), lambda i, sc: (0, 0)),
                pl.BlockSpec((1, H2), lambda i, sc: (0, 0)),
                pl.BlockSpec((H2, two_e), lambda i, sc: (0, 0)),
                pl.BlockSpec((1, two_e), lambda i, sc: (0, 0)),
            ],
            out_specs=[
                pl.BlockSpec((B, 1), lambda i, sc: (0, 0)),
                pl.BlockSpec((1, 1), lambda i, sc: (0, 0)),
                pl.BlockSpec((B, 1), lambda i, sc: (0, 0)),
            ],
        ),
        compiler_params=pltpu.CompilerParams(
            dimension_semantics=("arbitrary",),
            vmem_limit_bytes=vmem_limit),
        cost_estimate=mlp_cost,
    )(scalars, psum, w1, b1, w2, b2)

    # ---- call 3: streamed scale (lane-dense when possible) ------------------
    scale_cost = pl.CostEstimate(
        flops=int(B * S * H),
        transcendentals=0,
        bytes_accessed=int(2 * B * S * H * itemsize + 4 * B),
    )
    L = S * H
    if L % 128 == 0:
        # Lane-dense path: (B, S*H) slab -> output blocks with a large
        # multiple-of-128 last dim (unmasked vst writeback).
        tl = _choose_tile(L, 128, B * itemsize, tile_target)
        x2 = x.reshape(B, L)
        new_states = pl.pallas_call(
            _scale_kernel,
            out_shape=jax.ShapeDtypeStruct((B, L), x.dtype),
            grid_spec=pltpu.PrefetchScalarGridSpec(
                num_scalar_prefetch=0,
                grid=(L // tl,),
                in_specs=[
                    pl.BlockSpec((B, tl), lambda i: (0, i)),
                    pl.BlockSpec((B, 1), lambda i: (0, 0)),
                ],
                out_specs=pl.BlockSpec((B, tl), lambda i: (0, i)),
            ),
            compiler_params=pltpu.CompilerParams(
                dimension_semantics=("parallel",),
                vmem_limit_bytes=vmem_limit),
            cost_estimate=scale_cost,
        )(x2, conf).reshape(B, S, H)
    else:
        new_states = pl.pallas_call(
            _scale_kernel,
            out_shape=jax.ShapeDtypeStruct((B, S, H), x.dtype),
            grid_spec=pltpu.PrefetchScalarGridSpec(
                num_scalar_prefetch=0,
                grid=(n_s,),
                in_specs=[
                    pl.BlockSpec((B, ts, H), lambda i: (0, i, 0)),
                    pl.BlockSpec((B, 1), lambda i: (0, 0)),
                ],
                out_specs=pl.BlockSpec((B, ts, H), lambda i: (0, i, 0)),
            ),
            compiler_params=pltpu.CompilerParams(
                dimension_semantics=("parallel",),
                vmem_limit_bytes=vmem_limit),
            cost_estimate=scale_cost,
        )(x, conf)

    if squeeze:
        new_states = new_states[:, 0, :]
    return new_states, aux_loss[0, 0], next_pred[:, 0]


# ----------------------------------------------------------------------------
# Params / reference / test
# ----------------------------------------------------------------------------

def init_params(key, hidden_size, max_num_experts):
    h2 = hidden_size // 2
    k1, k2, k3 = jax.random.split(key, 3)
    lim1 = 1.0 / np.sqrt(hidden_size)
    w1 = jax.random.uniform(k1, (hidden_size, h2), jnp.float32, -lim1, lim1)
    b1 = jax.random.uniform(k2, (1, h2), jnp.float32, -lim1, lim1)
    # last layer: normal(mean=0, std=0.01) weight, constant 0.1 bias (as in __init__)
    w2 = 0.01 * jax.random.normal(k3, (h2, 2 * max_num_experts), jnp.float32)
    b2 = jnp.full((1, 2 * max_num_experts), 0.1, jnp.float32)
    return {"w1": w1, "b1": b1, "w2": w2, "b2": b2}


def _reference(params, x, expert_idx, E):
    pooled = jnp.mean(x, axis=1)
    h = jnp.maximum(pooled @ params["w1"] + params["b1"], 0.0)
    full = h @ params["w2"] + params["b2"]
    Emax = full.shape[1] // 2
    cur = full[:, :E]
    nxt = full[:, Emax:Emax + E]
    probs = jax.nn.softmax(cur, axis=-1)
    conf = probs[:, expert_idx]
    loss = jnp.mean(jax.nn.logsumexp(cur, axis=-1) - cur[:, expert_idx])
    pred = jnp.argmax(nxt, axis=-1).astype(jnp.int32)
    new_states = x * conf[:, None, None]
    return new_states, loss, pred


if __name__ == "__main__":
    hidden_size = 32
    max_num_experts = 4
    B, S = 2, 16          # S=16 with s_tile=8 exercises multi-tile + 2-way pooling

    key = jax.random.PRNGKey(0)
    kp, kx = jax.random.split(key)
    params = init_params(kp, hidden_size, max_num_experts)
    expert_output = jax.random.normal(kx, (B, S, hidden_size), jnp.float32)

    # Several (expert_idx, current_num_experts) pairs share one compiled kernel
    # (they are runtime SMEM scalars, not baked constants).
    for expert_idx, current_num_experts in [(1, 3), (2, 4), (0, 2)]:
        new_states, aux_loss, next_pred = praxis_controller_forward(
            params, expert_output, expert_idx, current_num_experts, s_tile=8)
        jax.block_until_ready((new_states, aux_loss, next_pred))

        ref_ns, ref_loss, ref_pred = _reference(
            params, expert_output, expert_idx, current_num_experts)

        assert np.allclose(np.asarray(new_states), np.asarray(ref_ns),
                           rtol=1e-5, atol=1e-5)
        assert np.allclose(float(aux_loss), float(ref_loss),
                           rtol=1e-5, atol=1e-5)
        assert np.array_equal(np.asarray(next_pred), np.asarray(ref_pred))

    # Auto tile selection path (no explicit s_tile).
    new_states, aux_loss, next_pred = praxis_controller_forward(
        params, expert_output, 1, 4)
    jax.block_until_ready((new_states, aux_loss, next_pred))
    ref_ns, ref_loss, ref_pred = _reference(params, expert_output, 1, 4)
    assert np.allclose(np.asarray(new_states), np.asarray(ref_ns),
                       rtol=1e-5, atol=1e-5)
    assert np.allclose(float(aux_loss), float(ref_loss), rtol=1e-5, atol=1e-5)
    assert np.array_equal(np.asarray(next_pred), np.asarray(ref_pred))

    print("KERNEL_OK")
</pallas_src>

<mosaic_0001>
module attributes {stable_mosaic.version = 11 : i64} {
  func.func @_pool_kernel(%arg0: i32, %arg1: i32, %arg2: memref<2x8x32xf32, #tpu.memory_space<vmem>>, %arg3: memref<1x2x32xf32, #tpu.memory_space<vmem>>) attributes {dimension_semantics = [#tpu.dimension_semantics<parallel>, #tpu.dimension_semantics<arbitrary>], iteration_bounds = array<i64: 2, 1>, scalar_prefetch = 0 : i64, scratch_operands = 0 : i64, tpu.core_type = #tpu.core_type<tc>, window_params = [{transform_indices = @transform_0, window_bounds = array<i64: 2, 8, 32>}, {transform_indices = @transform_1, window_bounds = array<i64: 1, 2, 32>}]} {
    %c0_i32 = arith.constant 0 : i32
    %0 = arith.cmpi eq, %arg1, %c0_i32 : i32
    %1 = arith.extui %0 : i1 to i32
    %c0_i32_0 = arith.constant 0 : i32
    %2 = arith.cmpi ne, %1, %c0_i32_0 : i32
    scf.if %2 {
      %cst_9 = arith.constant 0.000000e+00 : f32
      %9 = vector.broadcast %cst_9 : f32 to vector<1x2x32xf32>
      %c0_10 = arith.constant 0 : index
      %c0_11 = arith.constant 0 : index
      %c0_12 = arith.constant 0 : index
      %10 = vector.load %arg3[%c0_10, %c0_11, %c0_12] : memref<1x2x32xf32, #tpu.memory_space<vmem>>, vector<1x2x32xf32>
      tpu.vector_store %arg3[%c0_10, %c0_11, %c0_12], %9 {strides = array<i32>} : memref<1x2x32xf32, #tpu.memory_space<vmem>>, vector<1x2x32xf32>,
    } else {
    }
    %c0 = arith.constant 0 : index
    %c0_1 = arith.constant 0 : index
    %c0_2 = arith.constant 0 : index
    %3 = vector.load %arg3[%c0, %c0_1, %c0_2] : memref<1x2x32xf32, #tpu.memory_space<vmem>>, vector<1x2x32xf32>
    %c0_3 = arith.constant 0 : index
    %c0_4 = arith.constant 0 : index
    %c0_5 = arith.constant 0 : index
    %4 = vector.load %arg2[%c0_3, %c0_4, %c0_5] : memref<2x8x32xf32, #tpu.memory_space<vmem>>, vector<2x8x32xf32>
    %cst = arith.constant dense<0.000000e+00> : vector<2x32xf32>
    %5 = vector.multi_reduction <add>, %4, %cst [1] : vector<2x8x32xf32> to vector<2x32xf32>
    %6 = vector.shape_cast %5 : vector<2x32xf32> to vector<1x2x32xf32>
    %7 = arith.addf %3, %6 : vector<1x2x32xf32>
    %c0_6 = arith.constant 0 : index
    %c0_7 = arith.constant 0 : index
    %c0_8 = arith.constant 0 : index
    %8 = vector.load %arg3[%c0_6, %c0_7, %c0_8] : memref<1x2x32xf32, #tpu.memory_space<vmem>>, vector<1x2x32xf32>
    tpu.vector_store %arg3[%c0_6, %c0_7, %c0_8], %7 {strides = array<i32>} : memref<1x2x32xf32, #tpu.memory_space<vmem>>, vector<1x2x32xf32>,
    return
  }
  func.func @transform_0(%arg0: i32, %arg1: i32) -> (i32, i32, i32) {
    %c1_i32 = arith.constant 1 : i32
    %0 = arith.muli %arg0, %c1_i32 : i32
    %1 = arith.addi %0, %arg1 : i32
    %c0_i32 = arith.constant 0 : i32
    %c0_i32_0 = arith.constant 0 : i32
    %c0_i32_1 = arith.constant 0 : i32
    return %c0_i32, %1, %c0_i32_0 : i32, i32, i32
  }
  func.func @transform_1(%arg0: i32, %arg1: i32) -> (i32, i32, i32) {
    %c0_i32 = arith.constant 0 : i32
    %c0_i32_0 = arith.constant 0 : i32
    %c0_i32_1 = arith.constant 0 : i32
    return %arg0, %c0_i32, %c0_i32_0 : i32, i32, i32
  }
}

</mosaic_0001>

<llo_original>
// kernel: tpu_custom_call.1
$region0: #{tpu_custom_call.1}
  #allocation0 [shape = 'u32[]', space=smem, size = 0x4, offset = 0x4, fixed_abs, tag = 'smem constant byte address 0x4 - core index']
  #allocation1 [shape = 'u32[144,128]{1,0:T(1,128)}', space=vmem, size = 0x12000, scoped, tag = 'internal scratch']
  %s0 = inlined_call_operand.hbm [shape: f32[2,16,32], index: 0, kind: input, shape index: {}]
  %s1 = inlined_call_operand.hbm [shape: f32[2,2,32], index: 1, kind: output, shape index: {}]
  %s2 = sld [smem:[#allocation0]]
  $region45: #{tpu_custom_call.1} parent=0
    _
  %s4 = ssub.s32 1, %s2
  %s5 = scalar_select 0, %s4, %s2
  $region1: #{tpu_custom_call.1} parent=0
    #allocation2 [shape = 'u8[16384]{0}', space=vmem, size = 0x4000, scoped, tag = 'input window, operand 0']
    #allocation3 [shape = 's32[2]{0}', space=sflag, size = 0x8, scoped, tag = 'scoped memory for tpu_custom_call.1']
    #allocation4 [shape = 's32[2]{0}', space=sflag, size = 0x8, scoped, tag = 'scoped memory for tpu_custom_call.1']
    #allocation5 [shape = 'u8[2048]{0}', space=vmem, size = 0x800, scoped, tag = 'output window, operand 0']
    %6 = vsyncpa [#allocation3], 0
    %s7 = scalar_lea.sflag [#allocation3], 1
    %8 = vsyncpa %s7, 0
    %9 = vsyncpa [#allocation4], 0
    %s10 = scalar_lea.sflag [#allocation4], 1
    %11 = vsyncpa %s10, 0
    loop: start=0, step=1, limit=4
    $region2: #{tpu_custom_call.1} parent=1 // loop_pre_header
      _
    $region3: #{tpu_custom_call.1} parent=1 // loop_header
      %s13 = sphi 0, %s17
      %p14 = scmp.ge.s32.totalorder %s13, 4
      %s20 = sphi 0, %s32
      %s21 = sphi 0, %s28
      %s22 = sphi 0, %s20
      %s23 = sphi 0, %s21
      %s24 = sphi 0, %s22
      %s25 = sphi 0, %s23
      %s37 = sphi 0, %s39
      %s40 = sphi 0, %s37
      %s41 = sphi 0, %s40
      %s57 = sphi 0, %s41
      %s63 = sphi 0, %s65
      %s66 = sphi 0, %s63
      %s67 = sphi 0, %s66
      %s83 = sphi 0, %s67
    $region4: #{tpu_custom_call.1} parent=1 // loop_header_branch
      %16 = sbr.rel (%p14) target = $region8
    $region5: #{tpu_custom_call.1} parent=1 // loop_body
      %s18 = ssub.s32 %s13, 1
      %s19 = ssub.s32 %s13, 2
      %s26 = sadd.s32 1, %s21
      %p27 = scmp.ge.s32.totalorder %s26, 1
      %s28 = scalar_select %p27, 0, %s26
      %s29 = sadd.s32 1, %s20
      %s30 = scalar_select %p27, %s29, %s20
      %p31 = scmp.ge.s32.totalorder %s30, 2
      %s32 = scalar_select %p31, 0, %s30
      %s33 = sadd.s32 %s20, %s21
      %s34 = sadd.s32 %s32, %s28
      %s35 = ssub.s32 %s33, %s34
      %p36 = scmp.eq.s32.totalorder %s35, 0
      %s38 = sadd.s32 %s37, 1
      %s39 = scalar_select %p36, %s37, %s38
      %p42 = pneg %p36
      %p43 = scmp.eq.s32.totalorder %s13, 1
      %p44 = por %p42, %p43
      %p45 = scmp.ne.s32.totalorder %s37, %s40
      %p46 = scmp.eq.s32.totalorder %s13, 0
      %p47 = por %p45, %p46
      %p48 = scmp.ne.s32.totalorder %s37, %s40
      %p49 = scmp.eq.s32.totalorder %s18, 1
      %p50 = por %p48, %p49
      %p51 = scmp.ne.s32.totalorder %s40, %s41
      %p52 = scmp.eq.s32.totalorder %s18, 0
      %p53 = por %p51, %p52
      %p54 = scmp.ne.s32.totalorder %s40, %s41
      %p55 = scmp.eq.s32.totalorder %s19, 1
      %p56 = por %p54, %p55
      %p58 = scmp.ne.s32.totalorder %s41, %s57
      %p59 = scmp.eq.s32.totalorder %s19, 0
      %p60 = por %p58, %p59
      %s61 = ssub.s32 %s20, %s32
      %p62 = scmp.eq.s32.totalorder %s61, 0
      %s64 = sadd.s32 %s63, 1
      %s65 = scalar_select %p62, %s63, %s64
      %p68 = pneg %p62
      %p69 = scmp.eq.s32.totalorder %s13, 1
      %p70 = por %p68, %p69
      %p71 = scmp.ne.s32.totalorder %s63, %s66
      %p72 = scmp.eq.s32.totalorder %s13, 0
      %p73 = por %p71, %p72
      %p74 = scmp.ne.s32.totalorder %s63, %s66
      %p75 = scmp.eq.s32.totalorder %s18, 1
      %p76 = por %p74, %p75
      %p77 = scmp.ne.s32.totalorder %s66, %s67
      %p78 = scmp.eq.s32.totalorder %s18, 0
      %p79 = por %p77, %p78
      %p80 = scmp.ne.s32.totalorder %s66, %s67
      %p81 = scmp.eq.s32.totalorder %s19, 1
      %p82 = por %p80, %p81
      %p84 = scmp.ne.s32.totalorder %s67, %s83
      %p85 = scmp.eq.s32.totalorder %s19, 0
      %p86 = por %p84, %p85
      %p87 = scmp.le.s32.totalorder 1, %s13
      %p88 = scmp.lt.s32.totalorder %s13, 3
      %p89 = pnand %p87, %p88
      %p90 = pneg %p89
      // Predicated region
      $region9: #{tpu_custom_call.1} parent=5 // pred_check
        _
      $region10: #{tpu_custom_call.1} parent=5 // pred_check_branch
        %92 = sbr.rel (%p89) target = $region12
      $region11: #{tpu_custom_call.1} parent=5 // pred_region
        %s93 = ssub.s32 %s13, 1
      $region12: #{tpu_custom_call.1} parent=5 // pred_fallthru
        _
      %p94 = scmp.lt.s32.totalorder %s13, 2
      // Predicated region
      $region13: #{tpu_custom_call.1} parent=5 // pred_check
        %p95 = pneg %p94
      $region14: #{tpu_custom_call.1} parent=5 // pred_check_branch
        %97 = sbr.rel (%p95) target = $region16
      $region15: #{tpu_custom_call.1} parent=5 // pred_region
        // Predicated region
        $region17: #{tpu_custom_call.1} parent=15 // pred_check
          %p98 = pneg %p47
        $region18: #{tpu_custom_call.1} parent=15 // pred_check_branch
          %100 = sbr.rel (%p98) target = $region20
        $region19: #{tpu_custom_call.1} parent=15 // pred_region
          %s101 = sand.u32 %s37, 1
          %s102 = scalar_lea.sflag [#allocation3], %s101
          %s103 = sand.u32 %s37, 1
          %s104 = smul.addr %s103, 16
          %s105 = scalar_lea.vmem [#allocation2], %s104
          %s106 = sadd.s32 %s20, %s21
          %s108 = ssub.s32 256, 256
          %109 = vsyncadd %s102, %s108
          %s110 = smul.addr %s106, 128
          %s111 = scalar_lea.hbm %s0, %s110
          %s112 = sshll.u32 %s105, 4
          %s113 = int_to_ptr.vmem [resolvable:$true] %s112
          %118 = dma.hbm_to_vmem [thread:$0]  %s111, 256, %s113, %s102, 256, 128, 8
        $region20: #{tpu_custom_call.1} parent=15 // pred_fallthru
          _
      $region16: #{tpu_custom_call.1} parent=5 // pred_fallthru
        _
      %p119 = scmp.le.s32.totalorder 1, %s13
      %p120 = scmp.lt.s32.totalorder %s13, 3
      %p121 = pnand %p119, %p120
      %p122 = pneg %p121
      // Predicated region
      $region21: #{tpu_custom_call.1} parent=5 // pred_check
        _
      $region22: #{tpu_custom_call.1} parent=5 // pred_check_branch
        %124 = sbr.rel (%p121) target = $region24
      $region23: #{tpu_custom_call.1} parent=5 // pred_region
        %s125 = ssub.s32 %s13, 1
        %s126 = sand.u32 %s40, 1
        %s127 = scalar_lea.sflag [#allocation3], %s126
        %s128 = sand.u32 %s40, 1
        %s129 = smul.addr %s128, 16
        %s130 = scalar_lea.vmem [#allocation2], %s129
        // Predicated region
        $region25: #{tpu_custom_call.1} parent=23 // pred_check
          %p131 = pneg %p53
        $region26: #{tpu_custom_call.1} parent=23 // pred_check_branch
          %133 = sbr.rel (%p131) target = $region28
        $region27: #{tpu_custom_call.1} parent=23 // pred_region
          %134 = dma.done %s127, 256
        $region28: #{tpu_custom_call.1} parent=23 // pred_fallthru
          _
        %s135 = sand.u32 %s40, 1
        %s136 = scalar_lea.sflag [#allocation3], %s135
        %s137 = sand.u32 %s40, 1
        %s138 = smul.addr %s137, 16
        %s139 = scalar_lea.vmem [#allocation2], %s138
        %p140 = pneg %p53
        %p141 = pneg %p50
        %p142 = pneg %p79
        %p143 = pneg %p76
        %s144 = sand.u32 %s66, 1
        %s145 = scalar_lea.sflag [#allocation4], %s144
        %s146 = sand.u32 %s66, 1
        %s147 = smul.addr %s146, 2
        %s148 = scalar_lea.vmem [#allocation5], %s147
        %s149 = sadd.s32 %s22, %s23
        %p150 = scmp.eq.s32.totalorder %s23, 0
        // Predicated region
        $region29: #{tpu_custom_call.1} parent=23 // pred_check
          %p151 = pneg %p150
        $region30: #{tpu_custom_call.1} parent=23 // pred_check_branch
          %153 = sbr.rel (%p151) target = $region32
        $region31: #{tpu_custom_call.1} parent=23 // pred_region
          %vm154 = vcmask 254976
          %155 = vst.msk [vmem:[%s148] sm:$0x3] %vm154, 0.0
        $region32: #{tpu_custom_call.1} parent=23 // pred_fallthru
          _
        %v156 = vld [vmem:[%s148] sm:$0x3]
        %v157 = vld [vmem:[%s130] sm:$0xff]
        %v158 = vld [vmem:[%s130 + $0x8] sm:$0xff]
        %vm159 = vcmask 261120
        %v160 = vsel %vm159, %v157, 0.0
        %v161 = vrot.slane %v160, 4
        %v162 = vadd.f32 %v160, %v161
        %v163 = vrot.slane %v162, 2
        %v164 = vadd.f32 %v162, %v163
        %v165 = vrot.slane %v164, 1
        %v166 = vadd.f32 %v164, %v165
        %v167 = vsel %vm159, %v158, 0.0
        %v168 = vrot.slane %v167, 4
        %v169 = vadd.f32 %v167, %v168
        %v170 = vrot.slane %v169, 2
        %v171 = vadd.f32 %v169, %v170
        %v172 = vrot.slane %v171, 1
        %v173 = vadd.f32 %v171, %v172
        %vm176 = vcmask 1041409
        %v177 = vsel %vm176, %v173, %v166
        %v179 = vadd.f32 %v156, %v177
        %vm180 = vcmask 254976
        %181 = vst.msk [vmem:[%s148] sm:$0x3] %vm180, %v179
        %s182 = sand.u32 %s66, 1
        %s183 = scalar_lea.sflag [#allocation4], %s182
        %s184 = sand.u32 %s66, 1
        %s185 = smul.addr %s184, 2
        %s186 = scalar_lea.vmem [#allocation5], %s185
        // Predicated region
        $region33: #{tpu_custom_call.1} parent=23 // pred_check
          %p187 = pneg %p76
        $region34: #{tpu_custom_call.1} parent=23 // pred_check_branch
          %189 = sbr.rel (%p187) target = $region36
        $region35: #{tpu_custom_call.1} parent=23 // pred_region
          %s191 = ssub.s32 32, 32
          %192 = vsyncadd %s183, %s191
          %s193 = smul.addr %s22, 32
          %s194 = scalar_lea.hbm %s1, %s193
          %s196 = sshll.u32 %s186, 4
          %s197 = int_to_ptr.vmem [resolvable:$true] %s196
          %199 = dma.vmem_to_hbm [thread:$0]  %s197, 32, %s194, %s183
        $region36: #{tpu_custom_call.1} parent=23 // pred_fallthru
          _
      $region24: #{tpu_custom_call.1} parent=5 // pred_fallthru
        _
      %p200 = scmp.le.s32.totalorder 2, %s13
      // Predicated region
      $region37: #{tpu_custom_call.1} parent=5 // pred_check
        %p201 = pneg %p200
      $region38: #{tpu_custom_call.1} parent=5 // pred_check_branch
        %203 = sbr.rel (%p201) target = $region40
      $region39: #{tpu_custom_call.1} parent=5 // pred_region
        %s204 = ssub.s32 %s13, 2
        // Predicated region
        $region41: #{tpu_custom_call.1} parent=39 // pred_check
          %p205 = pneg %p82
        $region42: #{tpu_custom_call.1} parent=39 // pred_check_branch
          %207 = sbr.rel (%p205) target = $region44
        $region43: #{tpu_custom_call.1} parent=39 // pred_region
          %s208 = sand.u32 %s67, 1
          %s209 = scalar_lea.sflag [#allocation4], %s208
          %s210 = sand.u32 %s67, 1
          %s211 = smul.addr %s210, 2
          %s212 = scalar_lea.vmem [#allocation5], %s211
          %213 = dma.done %s209, 32
        $region44: #{tpu_custom_call.1} parent=39 // pred_fallthru
          _
      $region40: #{tpu_custom_call.1} parent=5 // pred_fallthru
        _
    $region6: #{tpu_custom_call.1} parent=1 // loop_footer
      %s17 = sadd.s32 1, %s13
    $region7: #{tpu_custom_call.1} parent=1 // loop_footer_branch
      %12 = sbr.rel target = $region3
    $region8: #{tpu_custom_call.1} parent=1 // loop_exit
      _
    %214 = vsyncpa [#allocation3], 1
    %s215 = scalar_lea.sflag [#allocation3], 1
    %216 = vsyncpa %s215, 1
    %217 = vsyncpa [#allocation4], 1
    %s218 = scalar_lea.sflag [#allocation4], 1
    %219 = vsyncpa %s218, 1

</llo_original>
